<compile_context>
chip_gen: v5e
topology: v5e:2x2
jax: 0.10.0
libtpu: 0.0.40
codegen_flags: <defaults>
</compile_context>

<pallas_src>
import numpy as np
import jax
import jax.numpy as jnp
from jax.experimental import pallas as pl
from jax.experimental.pallas import tpu as pltpu

# ---------------- model hyper-parameters (defaults of the module) -------------
NODE_SIZE = 4
EDGE_SIZE = 0          # default; edge_attr contributes zero columns -> omitted
HIDDEN_DIM = 32
OUT_CHANNELS = 1
NUM_FACTORIES = 3
NNODES = 4
D = NODE_SIZE + HIDDEN_DIM                       # 36
NFEAT = NNODES * NODE_SIZE                       # 16

# graph used for EdgeConv message passing (same graph replicated per batch elem)
GRAPH_EDGES = np.array(
    [[0, 1], [0, 2], [0, 3], [1, 0], [2, 0], [3, 0]], dtype=np.int32)   # [E, 2]
# policy edges (self.edges in the module)
POLICY_EDGES = np.array([[0, 1], [0, 2], [0, 3]], dtype=np.int32)       # [n_pe, 2]
E = GRAPH_EDGES.shape[0]
N_PE = POLICY_EDGES.shape[0]
N_ACT = N_PE + NUM_FACTORIES                     # 6
N_OUT_PAD = 8                                    # output rows padded to 8
EH = E * HIDDEN_DIM                              # 192
NHEAD = 16                                       # 8 alpha rows + 8 beta rows
NROWS = EH + NHEAD                               # 208


def _softplus(z):
    # numerically stable softplus (matches F.softplus)
    return jnp.maximum(z, 0.0) + jnp.log1p(jnp.exp(-jnp.abs(z)))


# --------------------------------- kernel ------------------------------------
def actor_kernel(x_ref, wx_ref, ball_ref, whh_ref, high_ref, out_ref):
    f32 = jnp.float32

    # One block matmul produces all 6 edge pre-activations AND the x-part of all
    # 12 head pre-activations:  z [208, TB].
    z = jnp.dot(wx_ref[...], x_ref[...], preferred_element_type=f32) + ball_ref[...]

    # All EdgeConv layer-1 messages at once:  h_all [192, TB].
    h_all = jnp.maximum(z[0:EH, :], 0.0)

    # EdgeConv layer-2 + static scatter-add + all alpha/beta heads, folded into
    # one [16,192] weight at pack time:  pre [16, TB].
    pre = z[EH:NROWS, :] + jnp.dot(whh_ref[...], h_all, preferred_element_type=f32)

    # alpha rows on sublanes 0..7, beta rows on sublanes 8..15 -> wide tile ops.
    alpha = _softplus(pre[0:N_OUT_PAD, :]) + 1e-20          # [8, TB]
    beta = _softplus(pre[N_OUT_PAD:NHEAD, :]) + 1e-20       # [8, TB]

    # ratio * high (pad rows have high=0) -> single unmasked full-tile store.
    out_ref[...] = (alpha / (alpha + beta)) * high_ref[...]


# ----------------------------- weight pre-packing -----------------------------
def _pack_params(params):
    """Fold the whole network (static graph) into 3 block weights.

    Returns:
      w_x_all [208, 16] : rows 0..191 = per-edge layer-1 weight blocks,
                          rows 192..207 = head weights acting on raw x.
      b_all   [208, 1]  : matching biases (head rows include the scatter-add
                          bias contribution W_head_a @ agg_bias and the 1e-20
                          pre-activation epsilon).
      w_head_h [16, 192]: (head weights acting on agg) @ (W2.T block-scatter),
                          i.e. EdgeConv layer 2 + scatter + heads folded.
    """
    (w1, b1, w2, b2, wmu, bmu, wsig, bsig, wmu2, bmu2, wsig2, bsig2) = [
        jnp.asarray(p, jnp.float32) for p in params]
    H = HIDDEN_DIM
    NS = NODE_SIZE

    w1a = w1[:NS].T                      # [H, NS]  (x_i part of EdgeConv mlp[0])
    w1b = w1[NS:2 * NS].T                # [H, NS]  (x_j part)
    b1c = b1.reshape(-1, 1)              # [H, 1]
    w2t = w2.T                           # [H, H]
    b2c = b2.reshape(-1, 1)              # [H, 1]

    # --- layer-1 block weight: row-block e computes h_e pre-activation -------
    WL1 = jnp.zeros((EH, NFEAT), jnp.float32)
    bL1 = jnp.zeros((EH, 1), jnp.float32)
    for e in range(E):
        i = int(GRAPH_EDGES[e, 0])
        j = int(GRAPH_EDGES[e, 1])
        WL1 = WL1.at[e * H:(e + 1) * H, i * NS:(i + 1) * NS].add(w1a)
        WL1 = WL1.at[e * H:(e + 1) * H, j * NS:(j + 1) * NS].add(w1b)
        bL1 = bL1.at[e * H:(e + 1) * H, :].set(b1c)

    # --- block-scatter weight: agg_all [4H] = Wsc @ h_all + agg_bias ---------
    Wsc = jnp.zeros((NNODES * H, EH), jnp.float32)
    agg_bias = jnp.zeros((NNODES * H, 1), jnp.float32)
    for e in range(E):
        i = int(GRAPH_EDGES[e, 0])                       # scatter target (src)
        Wsc = Wsc.at[i * H:(i + 1) * H, e * H:(e + 1) * H].set(w2t)
        agg_bias = agg_bias.at[i * H:(i + 1) * H, :].add(b2c)

    # --- packed head weights (rows 0..2 alpha policy, 3..5 alpha2 factory,
    #     6..7 pad, 8..10 beta policy, 11..13 beta2 factory, 14..15 pad) ------
    WHX = jnp.zeros((NHEAD, NFEAT), jnp.float32)
    WHA = jnp.zeros((NHEAD, NNODES * H), jnp.float32)
    bH = jnp.zeros((NHEAD, 1), jnp.float32)
    for (row0, wm, bm) in ((0, wmu, bmu), (N_OUT_PAD, wsig, bsig)):
        w_sx = wm[0:NS, 0]
        w_sa = wm[NS:D, 0]
        w_dx = wm[D:D + NS, 0]
        w_da = wm[D + NS:2 * D, 0]
        bias = bm.reshape(()) + 1e-20                    # fold pre-act epsilon
        for p in range(N_PE):
            s = int(POLICY_EDGES[p, 0])
            d = int(POLICY_EDGES[p, 1])
            r = row0 + p
            WHX = WHX.at[r, s * NS:(s + 1) * NS].add(w_sx)
            WHX = WHX.at[r, d * NS:(d + 1) * NS].add(w_dx)
            WHA = WHA.at[r, s * H:(s + 1) * H].add(w_sa)
            WHA = WHA.at[r, d * H:(d + 1) * H].add(w_da)
            bH = bH.at[r, 0].set(bias)
    for (row0, wm, bm) in ((N_PE, wmu2, bmu2), (N_OUT_PAD + N_PE, wsig2, bsig2)):
        w_x = wm[0:NS, 0]
        w_a = wm[NS:D, 0]
        bias = bm.reshape(()) + 1e-20
        for k in range(NUM_FACTORIES):
            n = NNODES - NUM_FACTORIES + k
            r = row0 + k
            WHX = WHX.at[r, n * NS:(n + 1) * NS].add(w_x)
            WHA = WHA.at[r, n * H:(n + 1) * H].add(w_a)
            bH = bH.at[r, 0].set(bias)

    # --- fold EdgeConv layer 2 + scatter into the head weight (linearity) ----
    WHH = WHA @ Wsc                                      # [16, 192]
    bH_total = bH + WHA @ agg_bias                       # [16, 1]

    w_x_all = jnp.concatenate([WL1, WHX], axis=0)        # [208, 16]
    b_all = jnp.concatenate([bL1, bH_total], axis=0)     # [208, 1]
    return w_x_all, b_all, WHH


# --------------------------------- wrapper -----------------------------------
def actor_forward(x, params, high, *, block_b=2048):
    """x: [B, nnodes, node_size] f32 (or pre-transposed [NFEAT, B]),
    high: [n_act] f32  ->  [B, n_act]."""
    f32 = jnp.float32

    if x.ndim == 2 and x.shape[0] == NFEAT:
        # producer already supplies the lane-batch layout: no extra HBM pass
        xt = x.astype(f32)
        B = x.shape[1]
    else:
        B = x.shape[0]
        xt = x.reshape(B, NFEAT).astype(f32).T           # [NFEAT, B]

    tb = int(block_b)
    nblk = int(pl.cdiv(B, tb))
    b_pad = nblk * tb
    if b_pad != B:
        xt = jnp.pad(xt, ((0, 0), (0, b_pad - B)))

    w_x_all, b_all, whh = _pack_params(params)
    high_pad = jnp.zeros((N_OUT_PAD, 1), f32).at[:N_ACT, 0].set(
        high.astype(f32))

    def const_spec(a):
        # full-array block, same block every grid step (fetched once)
        return pl.BlockSpec(a.shape, lambda b: (0,) * a.ndim)

    out = pl.pallas_call(
        actor_kernel,
        grid=(nblk,),
        in_specs=[pl.BlockSpec((NFEAT, tb), lambda b: (0, b)),
                  const_spec(w_x_all), const_spec(b_all), const_spec(whh),
                  const_spec(high_pad)],
        out_specs=pl.BlockSpec((N_OUT_PAD, tb), lambda b: (0, b)),
        out_shape=jax.ShapeDtypeStruct((N_OUT_PAD, b_pad), f32),
        compiler_params=pltpu.CompilerParams(
            dimension_semantics=("parallel",)),
    )(xt, w_x_all, b_all, whh, high_pad)

    return out[:N_ACT, :B].T                             # [B, n_act]


# ------------------------- deterministic parameter init -----------------------
def init_params(key):
    def lin(k, fan_in, fan_out):
        kw, kb = jax.random.split(k)
        lim = 1.0 / np.sqrt(fan_in)
        w = jax.random.uniform(kw, (fan_in, fan_out), minval=-lim, maxval=lim,
                               dtype=jnp.float32)
        b = jax.random.uniform(kb, (1, fan_out), minval=-lim, maxval=lim,
                               dtype=jnp.float32)
        return w, b

    ks = jax.random.split(key, 6)
    w1, b1 = lin(ks[0], 2 * NODE_SIZE + EDGE_SIZE, HIDDEN_DIM)   # EdgeConv mlp[0]
    w2, b2 = lin(ks[1], HIDDEN_DIM, HIDDEN_DIM)                  # EdgeConv mlp[2]
    wmu, bmu = lin(ks[2], 2 * D, OUT_CHANNELS)                   # h_to_mu
    wsig, bsig = lin(ks[3], 2 * D, OUT_CHANNELS)                 # h_to_sigma
    wmu2, bmu2 = lin(ks[4], D, OUT_CHANNELS)                     # h_to_mu_2
    wsig2, bsig2 = lin(ks[5], D, OUT_CHANNELS)                   # h_to_sigma_2
    return (w1, b1, w2, b2, wmu, bmu, wsig, bsig, wmu2, bmu2, wsig2, bsig2)


# ------------------------------ pure-JAX reference ----------------------------
def ref_forward(x, params, high):
    (w1, b1, w2, b2, wmu, bmu, wsig, bsig, wmu2, bmu2, wsig2, bsig2) = params
    B = x.shape[0]
    src, dst = GRAPH_EDGES[:, 0], GRAPH_EDGES[:, 1]
    xi = x[:, src, :]
    xj = x[:, dst, :]
    tmp = jnp.concatenate([xi, xj], axis=-1)
    h = jax.nn.relu(tmp @ w1 + b1[0])
    msg = h @ w2 + b2[0]
    agg = jnp.zeros((B, NNODES, HIDDEN_DIM), jnp.float32).at[:, src, :].add(msg)
    xpp = jnp.concatenate([x, agg], axis=-1)
    ef = jnp.concatenate(
        [xpp[:, POLICY_EDGES[:, 0], :], xpp[:, POLICY_EDGES[:, 1], :]], axis=-1)
    alpha = jax.nn.softplus((ef @ wmu + bmu[0])[..., 0] + 1e-20) + 1e-20
    beta = jax.nn.softplus((ef @ wsig + bsig[0])[..., 0] + 1e-20) + 1e-20
    fac = xpp[:, -NUM_FACTORIES:, :]
    alpha2 = jax.nn.softplus((fac @ wmu2 + bmu2[0])[..., 0] + 1e-20) + 1e-20
    beta2 = jax.nn.softplus((fac @ wsig2 + bsig2[0])[..., 0] + 1e-20) + 1e-20
    dis = alpha / (alpha + beta) * high[:-NUM_FACTORIES]
    order = alpha2 / (alpha2 + beta2) * high[-NUM_FACTORIES:]
    return jnp.concatenate([dis, order], axis=-1)


# ----------------------------------- main -------------------------------------
if __name__ == "__main__":
    key = jax.random.PRNGKey(0)
    k_param, k_x = jax.random.split(key)

    B = 200                                            # non-multiple of the tile
    x = jax.random.normal(k_x, (B, NNODES, NODE_SIZE), dtype=jnp.float32)
    params = init_params(k_param)
    high = jnp.arange(1, N_ACT + 1, dtype=jnp.float32) * 10.0   # action bounds

    # small test tile (grid of 2 batch tiles); production default is block_b=2048
    act = actor_forward(x, params, high, block_b=128)
    act = jax.block_until_ready(act)

    ref = ref_forward(x, params, high)
    np.testing.assert_allclose(np.asarray(act), np.asarray(ref),
                               rtol=2e-5, atol=2e-5)

    print("KERNEL_OK")
</pallas_src>

<mosaic_0001>
module attributes {stable_mosaic.version = 11 : i64} {
  func.func @actor_kernel(%arg0: i32, %arg1: memref<16x128xf32, #tpu.memory_space<vmem>>, %arg2: memref<208x16xf32, #tpu.memory_space<vmem>>, %arg3: memref<208x1xf32, #tpu.memory_space<vmem>>, %arg4: memref<16x192xf32, #tpu.memory_space<vmem>>, %arg5: memref<8x1xf32, #tpu.memory_space<vmem>>, %arg6: memref<8x128xf32, #tpu.memory_space<vmem>>) attributes {dimension_semantics = [#tpu.dimension_semantics<parallel>], iteration_bounds = array<i64: 2>, scalar_prefetch = 0 : i64, scratch_operands = 0 : i64, tpu.core_type = #tpu.core_type<tc>, window_params = [{transform_indices = @transform_0, window_bounds = array<i64: 16, 128>}, {pipeline_mode = #tpu.pipeline_mode<synchronous>, transform_indices = @transform_1, window_bounds = array<i64: 208, 16>}, {pipeline_mode = #tpu.pipeline_mode<synchronous>, transform_indices = @transform_2, window_bounds = array<i64: 208, 1>}, {pipeline_mode = #tpu.pipeline_mode<synchronous>, transform_indices = @transform_3, window_bounds = array<i64: 16, 192>}, {pipeline_mode = #tpu.pipeline_mode<synchronous>, transform_indices = @transform_4, window_bounds = array<i64: 8, 1>}, {transform_indices = @transform_5, window_bounds = array<i64: 8, 128>}]} {
    %c0 = arith.constant 0 : index
    %c0_0 = arith.constant 0 : index
    %0 = vector.load %arg2[%c0, %c0_0] : memref<208x16xf32, #tpu.memory_space<vmem>>, vector<208x16xf32>
    %c0_1 = arith.constant 0 : index
    %c0_2 = arith.constant 0 : index
    %1 = vector.load %arg1[%c0_1, %c0_2] : memref<16x128xf32, #tpu.memory_space<vmem>>, vector<16x128xf32>
    %cst = arith.constant dense<0.000000e+00> : vector<208x128xf32>
    %2 = tpu.matmul %0, %1, %cst {dimension_numbers = #tpu.dot_dimension_numbers<[1], [0], [0], [1], [0, 0, 1, 1], [], []>} : vector<208x16xf32>, vector<16x128xf32>, vector<208x128xf32> -> vector<208x128xf32>
    %c0_3 = arith.constant 0 : index
    %c0_4 = arith.constant 0 : index
    %3 = vector.load %arg3[%c0_3, %c0_4] : memref<208x1xf32, #tpu.memory_space<vmem>>, vector<208x1xf32>
    %4 = vector.broadcast %3 : vector<208x1xf32> to vector<208x128xf32>
    %5 = arith.addf %2, %4 : vector<208x128xf32>
    %6 = vector.extract_strided_slice %5 {offsets = [0, 0], sizes = [192, 128], strides = [1, 1]} : vector<208x128xf32> to vector<192x128xf32>
    %cst_5 = arith.constant 0.000000e+00 : f32
    %7 = vector.broadcast %cst_5 : f32 to vector<192x128xf32>
    %8 = arith.maximumf %6, %7 : vector<192x128xf32>
    %9 = vector.extract_strided_slice %5 {offsets = [192, 0], sizes = [16, 128], strides = [1, 1]} : vector<208x128xf32> to vector<16x128xf32>
    %c0_6 = arith.constant 0 : index
    %c0_7 = arith.constant 0 : index
    %10 = vector.load %arg4[%c0_6, %c0_7] : memref<16x192xf32, #tpu.memory_space<vmem>>, vector<16x192xf32>
    %cst_8 = arith.constant dense<0.000000e+00> : vector<16x128xf32>
    %11 = tpu.matmul %10, %8, %cst_8 {dimension_numbers = #tpu.dot_dimension_numbers<[1], [0], [0], [1], [0, 0, 1, 1], [], []>} : vector<16x192xf32>, vector<192x128xf32>, vector<16x128xf32> -> vector<16x128xf32>
    %12 = arith.addf %9, %11 : vector<16x128xf32>
    %13 = vector.extract_strided_slice %12 {offsets = [0, 0], sizes = [8, 128], strides = [1, 1]} : vector<16x128xf32> to vector<8x128xf32>
    %cst_9 = arith.constant 0.000000e+00 : f32
    %14 = vector.broadcast %cst_9 : f32 to vector<8x128xf32>
    %15 = arith.maximumf %13, %14 : vector<8x128xf32>
    %16 = math.absf %13 : vector<8x128xf32>
    %cst_10 = arith.constant 0.000000e+00 : f32
    %17 = vector.broadcast %cst_10 : f32 to vector<8x128xf32>
    %18 = arith.subf %17, %16 : vector<8x128xf32>
    %19 = math.exp %18 : vector<8x128xf32>
    %20 = math.log1p %19 : vector<8x128xf32>
    %21 = arith.addf %15, %20 : vector<8x128xf32>
    %cst_11 = arith.constant 9.99999968E-21 : f32
    %22 = vector.broadcast %cst_11 : f32 to vector<8x128xf32>
    %23 = arith.addf %21, %22 : vector<8x128xf32>
    %24 = vector.extract_strided_slice %12 {offsets = [8, 0], sizes = [8, 128], strides = [1, 1]} : vector<16x128xf32> to vector<8x128xf32>
    %cst_12 = arith.constant 0.000000e+00 : f32
    %25 = vector.broadcast %cst_12 : f32 to vector<8x128xf32>
    %26 = arith.maximumf %24, %25 : vector<8x128xf32>
    %27 = math.absf %24 : vector<8x128xf32>
    %cst_13 = arith.constant 0.000000e+00 : f32
    %28 = vector.broadcast %cst_13 : f32 to vector<8x128xf32>
    %29 = arith.subf %28, %27 : vector<8x128xf32>
    %30 = math.exp %29 : vector<8x128xf32>
    %31 = math.log1p %30 : vector<8x128xf32>
    %32 = arith.addf %26, %31 : vector<8x128xf32>
    %cst_14 = arith.constant 9.99999968E-21 : f32
    %33 = vector.broadcast %cst_14 : f32 to vector<8x128xf32>
    %34 = arith.addf %32, %33 : vector<8x128xf32>
    %35 = arith.addf %23, %34 : vector<8x128xf32>
    %36 = arith.divf %23, %35 : vector<8x128xf32>
    %c0_15 = arith.constant 0 : index
    %c0_16 = arith.constant 0 : index
    %37 = vector.load %arg5[%c0_15, %c0_16] : memref<8x1xf32, #tpu.memory_space<vmem>>, vector<8x1xf32>
    %38 = vector.broadcast %37 : vector<8x1xf32> to vector<8x128xf32>
    %39 = arith.mulf %36, %38 : vector<8x128xf32>
    %c0_17 = arith.constant 0 : index
    %c0_18 = arith.constant 0 : index
    %40 = vector.load %arg6[%c0_17, %c0_18] : memref<8x128xf32, #tpu.memory_space<vmem>>, vector<8x128xf32>
    tpu.vector_store %arg6[%c0_17, %c0_18], %39 {strides = array<i32>} : memref<8x128xf32, #tpu.memory_space<vmem>>, vector<8x128xf32>,
    return
  }
  func.func @transform_0(%arg0: i32) -> (i32, i32) {
    %c0_i32 = arith.constant 0 : i32
    %c0_i32_0 = arith.constant 0 : i32
    return %c0_i32, %arg0 : i32, i32
  }
  func.func @transform_1(%arg0: i32) -> (i32, i32) {
    %c0_i32 = arith.constant 0 : i32
    %c0_i32_0 = arith.constant 0 : i32
    %c0_i32_1 = arith.constant 0 : i32
    return %c0_i32, %c0_i32_0 : i32, i32
  }
  func.func @transform_2(%arg0: i32) -> (i32, i32) {
    %c0_i32 = arith.constant 0 : i32
    %c0_i32_0 = arith.constant 0 : i32
    %c0_i32_1 = arith.constant 0 : i32
    return %c0_i32, %c0_i32_0 : i32, i32
  }
  func.func @transform_3(%arg0: i32) -> (i32, i32) {
    %c0_i32 = arith.constant 0 : i32
    %c0_i32_0 = arith.constant 0 : i32
    %c0_i32_1 = arith.constant 0 : i32
    return %c0_i32, %c0_i32_0 : i32, i32
  }
  func.func @transform_4(%arg0: i32) -> (i32, i32) {
    %c0_i32 = arith.constant 0 : i32
    %c0_i32_0 = arith.constant 0 : i32
    %c0_i32_1 = arith.constant 0 : i32
    return %c0_i32, %c0_i32_0 : i32, i32
  }
  func.func @transform_5(%arg0: i32) -> (i32, i32) {
    %c0_i32 = arith.constant 0 : i32
    %c0_i32_0 = arith.constant 0 : i32
    return %c0_i32, %arg0 : i32, i32
  }
}

</mosaic_0001>

<llo_original>
// kernel: tpu_custom_call.1
$region0: #{tpu_custom_call.1}
  #allocation0 [shape = 'u32[]', space=smem, size = 0x4, offset = 0x4, fixed_abs, tag = 'smem constant byte address 0x4 - core index']
  #allocation1 [shape = 'u32[72,128]{1,0:T(1,128)}', space=vmem, size = 0x9000, scoped, tag = 'internal scratch']
  %s0 = inlined_call_operand.vmem [shape: f32[16,256], index: 0, kind: input, shape index: {}]
  %s1 = inlined_call_operand.vmem [shape: f32[208,16], index: 1, kind: input, shape index: {}]
  %s2 = inlined_call_operand.vmem [shape: f32[208,1], index: 2, kind: input, shape index: {}]
  %s3 = inlined_call_operand.vmem [shape: f32[16,192], index: 3, kind: input, shape index: {}]
  %s4 = inlined_call_operand.vmem [shape: f32[8,1], index: 4, kind: input, shape index: {}]
  %s5 = inlined_call_operand.hbm [shape: f32[8,256], index: 5, kind: output, shape index: {}]
  %s6 = sld [smem:[#allocation0]]
  $region91: #{tpu_custom_call.1} parent=0
    _
  %s8 = ssub.s32 1, %s6
  %s9 = scalar_select 0, %s8, %s6
  $region1: #{tpu_custom_call.1} parent=0
    #allocation2 [shape = 'u8[16384]{0}', space=vmem, size = 0x4000, scoped, tag = 'input window, operand 0']
    #allocation3 [shape = 'u8[8192]{0}', space=vmem, size = 0x2000, scoped, tag = 'output window, operand 0']
    #allocation4 [shape = 's32[2]{0}', space=sflag, size = 0x8, scoped, tag = 'scoped memory for tpu_custom_call.1']
    %10 = vsyncpa [#allocation4], 0
    %s11 = scalar_lea.sflag [#allocation4], 1
    %12 = vsyncpa %s11, 0
    loop: start=0, step=1, limit=4
    $region2: #{tpu_custom_call.1} parent=1 // loop_pre_header
      _
    $region3: #{tpu_custom_call.1} parent=1 // loop_header
      %s14 = sphi 0, %s18
      %p15 = scmp.ge.s32.totalorder %s14, 4
      %s24 = sphi 0, %s26
      %s27 = sphi 0, %s24
      %s28 = sphi 0, %s27
      %s44 = sphi 0, %s28
      %s48 = sphi 0, %s48
      %s50 = sphi 0, %s48
      %s51 = sphi 0, %s50
      %s65 = sphi 0, %s51
      %s69 = sphi 0, %s69
      %s71 = sphi 0, %s69
      %s72 = sphi 0, %s71
      %s86 = sphi 0, %s72
      %s90 = sphi 0, %s90
      %s92 = sphi 0, %s90
      %s93 = sphi 0, %s92
      %s107 = sphi 0, %s93
      %s111 = sphi 0, %s111
      %s113 = sphi 0, %s111
      %s114 = sphi 0, %s113
      %s128 = sphi 0, %s114
      %s134 = sphi 0, %s136
      %s137 = sphi 0, %s134
      %s138 = sphi 0, %s137
      %s154 = sphi 0, %s138
    $region4: #{tpu_custom_call.1} parent=1 // loop_header_branch
      %17 = sbr.rel (%p15) target = $region8
    $region5: #{tpu_custom_call.1} parent=1 // loop_body
      %s19 = ssub.s32 %s14, 1
      %s20 = ssub.s32 %s14, 2
      %s21 = sadd.s32 %s14, 1
      %s22 = ssub.s32 %s14, %s21
      %p23 = scmp.eq.s32.totalorder %s22, 0
      %s25 = sadd.s32 %s24, 1
      %s26 = scalar_select %p23, %s24, %s25
      %p29 = pneg %p23
      %p30 = scmp.eq.s32.totalorder %s14, 1
      %p31 = por %p29, %p30
      %p32 = scmp.ne.s32.totalorder %s24, %s27
      %p33 = scmp.eq.s32.totalorder %s14, 0
      %p34 = por %p32, %p33
      %p35 = scmp.ne.s32.totalorder %s24, %s27
      %p36 = scmp.eq.s32.totalorder %s19, 1
      %p37 = por %p35, %p36
      %p38 = scmp.ne.s32.totalorder %s27, %s28
      %p39 = scmp.eq.s32.totalorder %s19, 0
      %p40 = por %p38, %p39
      %p41 = scmp.ne.s32.totalorder %s27, %s28
      %p42 = scmp.eq.s32.totalorder %s20, 1
      %p43 = por %p41, %p42
      %p45 = scmp.ne.s32.totalorder %s28, %s44
      %p46 = scmp.eq.s32.totalorder %s20, 0
      %p47 = por %p45, %p46
      %s49 = sadd.s32 %s48, 1
      %p52 = scmp.eq.s32.totalorder %s14, 1
      %p53 = scmp.ne.s32.totalorder %s48, %s50
      %p54 = scmp.eq.s32.totalorder %s14, 0
      %p55 = por %p53, %p54
      %p56 = scmp.ne.s32.totalorder %s48, %s50
      %p57 = scmp.eq.s32.totalorder %s19, 1
      %p58 = por %p56, %p57
      %p59 = scmp.ne.s32.totalorder %s50, %s51
      %p60 = scmp.eq.s32.totalorder %s19, 0
      %p61 = por %p59, %p60
      %p62 = scmp.ne.s32.totalorder %s50, %s51
      %p63 = scmp.eq.s32.totalorder %s20, 1
      %p64 = por %p62, %p63
      %p66 = scmp.ne.s32.totalorder %s51, %s65
      %p67 = scmp.eq.s32.totalorder %s20, 0
      %p68 = por %p66, %p67
      %s70 = sadd.s32 %s69, 1
      %p73 = scmp.eq.s32.totalorder %s14, 1
      %p74 = scmp.ne.s32.totalorder %s69, %s71
      %p75 = scmp.eq.s32.totalorder %s14, 0
      %p76 = por %p74, %p75
      %p77 = scmp.ne.s32.totalorder %s69, %s71
      %p78 = scmp.eq.s32.totalorder %s19, 1
      %p79 = por %p77, %p78
      %p80 = scmp.ne.s32.totalorder %s71, %s72
      %p81 = scmp.eq.s32.totalorder %s19, 0
      %p82 = por %p80, %p81
      %p83 = scmp.ne.s32.totalorder %s71, %s72
      %p84 = scmp.eq.s32.totalorder %s20, 1
      %p85 = por %p83, %p84
      %p87 = scmp.ne.s32.totalorder %s72, %s86
      %p88 = scmp.eq.s32.totalorder %s20, 0
      %p89 = por %p87, %p88
      %s91 = sadd.s32 %s90, 1
      %p94 = scmp.eq.s32.totalorder %s14, 1
      %p95 = scmp.ne.s32.totalorder %s90, %s92
      %p96 = scmp.eq.s32.totalorder %s14, 0
      %p97 = por %p95, %p96
      %p98 = scmp.ne.s32.totalorder %s90, %s92
      %p99 = scmp.eq.s32.totalorder %s19, 1
      %p100 = por %p98, %p99
      %p101 = scmp.ne.s32.totalorder %s92, %s93
      %p102 = scmp.eq.s32.totalorder %s19, 0
      %p103 = por %p101, %p102
      %p104 = scmp.ne.s32.totalorder %s92, %s93
      %p105 = scmp.eq.s32.totalorder %s20, 1
      %p106 = por %p104, %p105
      %p108 = scmp.ne.s32.totalorder %s93, %s107
      %p109 = scmp.eq.s32.totalorder %s20, 0
      %p110 = por %p108, %p109
      %s112 = sadd.s32 %s111, 1
      %p115 = scmp.eq.s32.totalorder %s14, 1
      %p116 = scmp.ne.s32.totalorder %s111, %s113
      %p117 = scmp.eq.s32.totalorder %s14, 0
      %p118 = por %p116, %p117
      %p119 = scmp.ne.s32.totalorder %s111, %s113
      %p120 = scmp.eq.s32.totalorder %s19, 1
      %p121 = por %p119, %p120
      %p122 = scmp.ne.s32.totalorder %s113, %s114
      %p123 = scmp.eq.s32.totalorder %s19, 0
      %p124 = por %p122, %p123
      %p125 = scmp.ne.s32.totalorder %s113, %s114
      %p126 = scmp.eq.s32.totalorder %s20, 1
      %p127 = por %p125, %p126
      %p129 = scmp.ne.s32.totalorder %s114, %s128
      %p130 = scmp.eq.s32.totalorder %s20, 0
      %p131 = por %p129, %p130
      %s132 = ssub.s32 %s14, %s21
      %p133 = scmp.eq.s32.totalorder %s132, 0
      %s135 = sadd.s32 %s134, 1
      %s136 = scalar_select %p133, %s134, %s135
      %p139 = pneg %p133
      %p140 = scmp.eq.s32.totalorder %s14, 1
      %p141 = por %p139, %p140
      %p142 = scmp.ne.s32.totalorder %s134, %s137
      %p143 = scmp.eq.s32.totalorder %s14, 0
      %p144 = por %p142, %p143
      %p145 = scmp.ne.s32.totalorder %s134, %s137
      %p146 = scmp.eq.s32.totalorder %s19, 1
      %p147 = por %p145, %p146
      %p148 = scmp.ne.s32.totalorder %s137, %s138
      %p149 = scmp.eq.s32.totalorder %s19, 0
      %p150 = por %p148, %p149
      %p151 = scmp.ne.s32.totalorder %s137, %s138
      %p152 = scmp.eq.s32.totalorder %s20, 1
      %p153 = por %p151, %p152
      %p155 = scmp.ne.s32.totalorder %s138, %s154
      %p156 = scmp.eq.s32.totalorder %s20, 0
      %p157 = por %p155, %p156
      %p158 = scmp.le.s32.totalorder 1, %s14
      %p159 = scmp.lt.s32.totalorder %s14, 3
      %p160 = pnand %p158, %p159
      %p161 = pneg %p160
      // Predicated region
      $region9: #{tpu_custom_call.1} parent=5 // pred_check
        _
      $region10: #{tpu_custom_call.1} parent=5 // pred_check_branch
        %163 = sbr.rel (%p160) target = $region12
      $region11: #{tpu_custom_call.1} parent=5 // pred_region
        %s164 = ssub.s32 %s14, 1
        // Predicated region
        $region13: #{tpu_custom_call.1} parent=11 // pred_check
          %p165 = pneg %p61
        $region14: #{tpu_custom_call.1} parent=11 // pred_check_branch
          %167 = sbr.rel (%p165) target = $region16
        $region15: #{tpu_custom_call.1} parent=11 // pred_region
          _
        $region16: #{tpu_custom_call.1} parent=11 // pred_fallthru
          _
        // Predicated region
        $region17: #{tpu_custom_call.1} parent=11 // pred_check
          %p168 = pneg %p82
        $region18: #{tpu_custom_call.1} parent=11 // pred_check_branch
          %170 = sbr.rel (%p168) target = $region20
        $region19: #{tpu_custom_call.1} parent=11 // pred_region
          _
        $region20: #{tpu_custom_call.1} parent=11 // pred_fallthru
          _
        // Predicated region
        $region21: #{tpu_custom_call.1} parent=11 // pred_check
          %p171 = pneg %p103
        $region22: #{tpu_custom_call.1} parent=11 // pred_check_branch
          %173 = sbr.rel (%p171) target = $region24
        $region23: #{tpu_custom_call.1} parent=11 // pred_region
          _
        $region24: #{tpu_custom_call.1} parent=11 // pred_fallthru
          _
        // Predicated region
        $region25: #{tpu_custom_call.1} parent=11 // pred_check
          %p174 = pneg %p124
        $region26: #{tpu_custom_call.1} parent=11 // pred_check_branch
          %176 = sbr.rel (%p174) target = $region28
        $region27: #{tpu_custom_call.1} parent=11 // pred_region
          _
        $region28: #{tpu_custom_call.1} parent=11 // pred_fallthru
          _
      $region12: #{tpu_custom_call.1} parent=5 // pred_fallthru
        _
      %p177 = scmp.lt.s32.totalorder %s14, 2
      // Predicated region
      $region29: #{tpu_custom_call.1} parent=5 // pred_check
        %p178 = pneg %p177
      $region30: #{tpu_custom_call.1} parent=5 // pred_check_branch
        %180 = sbr.rel (%p178) target = $region32
      $region31: #{tpu_custom_call.1} parent=5 // pred_region
        // Predicated region
        $region33: #{tpu_custom_call.1} parent=31 // pred_check
          %p181 = pneg %p34
        $region34: #{tpu_custom_call.1} parent=31 // pred_check_branch
          %183 = sbr.rel (%p181) target = $region36
        $region35: #{tpu_custom_call.1} parent=31 // pred_region
          %s184 = sand.u32 %s24, 1
          %s185 = sand.u32 %s24, 1
          %s186 = smul.addr %s185, 16
          %s187 = scalar_lea.vmem [#allocation2], %s186
          %s188 = smul.addr %s14, 8
          %s189 = scalar_lea.vmem %s0, %s188
          // Predicated region
          $region37: #{tpu_custom_call.1} parent=35 // pred_check
            _
          $region38: #{tpu_custom_call.1} parent=35 // pred_check_branch
            %191 = sbr.rel (0) target = $region40
          $region39: #{tpu_custom_call.1} parent=35 // pred_region
            // Predicated region
            $region41: #{tpu_custom_call.1} parent=39 // pred_check
              _
            $region42: #{tpu_custom_call.1} parent=39 // pred_check_branch
              %193 = sbr.rel (0) target = $region44
            $region43: #{tpu_custom_call.1} parent=39 // pred_region
              // Predicated region
              $region56: #{tpu_custom_call.1} parent=43 // pred_check
                _
              $region57: #{tpu_custom_call.1} parent=43 // pred_check_branch
                %211 = sbr.rel (0) target = $region59
              $region58: #{tpu_custom_call.1} parent=43 // pred_region
                loop: start=0, step=1, limit=1
                $region60: #{tpu_custom_call.1} parent=58 // loop_pre_header
                  _
                $region61: #{tpu_custom_call.1} parent=58 // loop_header
                  %s213 = sphi 0, %s217
                  %p214 = scmp.ge.s32.totalorder %s213, 1
                  %s218 = sphi %s189, %s189
                  %s219 = sphi %s187, %s187
                $region62: #{tpu_custom_call.1} parent=58 // loop_header_branch
                  %216 = sbr.rel (%p214) target = $region66
                $region63: #{tpu_custom_call.1} parent=58 // loop_body
                  %v220 = vld [vmem:[%s218] sm:$0xff]
                  %221 = vst [vmem:[%s219] sm:$0xff] %v220
                  %v222 = vld [vmem:[%s218 + $0x10] sm:$0xff]
                  %223 = vst [vmem:[%s219 + $0x8] sm:$0xff] %v222
                $region64: #{tpu_custom_call.1} parent=58 // loop_footer
                  %s217 = sadd.s32 1, %s213
                $region65: #{tpu_custom_call.1} parent=58 // loop_footer_branch
                  %212 = sbr.rel target = $region61
                $region66: #{tpu_custom_call.1} parent=58 // loop_exit
                  _
              $region59: #{tpu_custom_call.1} parent=43 // pred_fallthru
                _
              // Predicated region
              $region67: #{tpu_custom_call.1} parent=43 // pred_check
                _
              $region68: #{tpu_custom_call.1} parent=43 // pred_check_branch
                %225 = sbr.rel target = $region70
              $region69: #{tpu_custom_call.1} parent=43 // pred_region
                _
              $region70: #{tpu_custom_call.1} parent=43 // pred_fallthru
                _
            $region44: #{tpu_custom_call.1} parent=39 // pred_fallthru
              _
            // Predicated region
            $region45: #{tpu_custom_call.1} parent=39 // pred_check
              _
            $region46: #{tpu_custom_call.1} parent=39 // pred_check_branch
              %195 = sbr.rel target = $region48
            $region47: #{tpu_custom_call.1} parent=39 // pred_region
              %s197 = ssub.s32 256, 1
              loop: start=0, step=1, limit=1
              $region49: #{tpu_custom_call.1} parent=47 // loop_pre_header
                _
              $region50: #{tpu_custom_call.1} parent=47 // loop_header
                %s199 = sphi 0, %s203
                %p200 = scmp.ge.s32.totalorder %s199, 1
                %s204 = sphi %s189, %s189
                %s205 = sphi %s187, %s187
              $region51: #{tpu_custom_call.1} parent=47 // loop_header_branch
                %202 = sbr.rel (%p200) target = $region55
              $region52: #{tpu_custom_call.1} parent=47 // loop_body
                %v206 = vld [vmem:[%s204] sm:%s197]
                %207 = vst [vmem:[%s205] sm:%s197] %v206
                %v208 = vld [vmem:[%s204 + $0x10] sm:%s197]
                %209 = vst [vmem:[%s205 + $0x8] sm:%s197] %v208
              $region53: #{tpu_custom_call.1} parent=47 // loop_footer
                %s203 = sadd.s32 1, %s199
              $region54: #{tpu_custom_call.1} parent=47 // loop_footer_branch
                %198 = sbr.rel target = $region50
              $region55: #{tpu_custom_call.1} parent=47 // loop_exit
                _
            $region48: #{tpu_custom_call.1} parent=39 // pred_fallthru
              _
          $region40: #{tpu_custom_call.1} parent=35 // pred_fallthru
            _
          %226 = vnop
        $region36: #{tpu_custom_call.1} parent=31 // pred_fallthru
          _
      $region32: #{tpu_custom_call.1} parent=5 // pred_fallthru
        _
      %p227 = scmp.le.s32.totalorder 1, %s14
      %p228 = scmp.lt.s32.totalorder %s14, 3
      %p229 = pnand %p227, %p228
      %p230 = pneg %p229
      // Predicated region
      $region71: #{tpu_custom_call.1} parent=5 // pred_check
        _
      $region72: #{tpu_custom_call.1} parent=5 // pred_check_branch
        %232 = sbr.rel (%p229) target = $region74
      $region73: #{tpu_custom_call.1} parent=5 // pred_region
        %s233 = ssub.s32 %s14, 1
        %s234 = sand.u32 %s27, 1
        %s235 = sand.u32 %s27, 1
        %s236 = smul.addr %s235, 16
        %s237 = scalar_lea.vmem [#allocation2], %s236
        // Predicated region
        $region75: #{tpu_custom_call.1} parent=73 // pred_check
          %p238 = pneg %p40
        $region76: #{tpu_custom_call.1} parent=73 // pred_check_branch
          %240 = sbr.rel (%p238) target = $region78
        $region77: #{tpu_custom_call.1} parent=73 // pred_region
          _
        $region78: #{tpu_custom_call.1} parent=73 // pred_fallthru
          _
        %s241 = sand.u32 %s27, 1
        %s242 = sand.u32 %s27, 1
        %s243 = smul.addr %s242, 16
        %s244 = scalar_lea.vmem [#allocation2], %s243
        %p245 = pneg %p40
        %p246 = pneg %p37
        %p247 = pneg %p61
        %p248 = pneg %p58
        %p249 = pneg %p82
        %p250 = pneg %p79
        %p251 = pneg %p103
        %p252 = pneg %p100
        %p253 = pneg %p124
        %p254 = pneg %p121
        %p255 = pneg %p150
        %p256 = pneg %p147
        %s257 = sand.u32 %s137, 1
        %s258 = scalar_lea.sflag [#allocation4], %s257
        %s259 = sand.u32 %s137, 1
        %s260 = smul.addr %s259, 8
        %s261 = scalar_lea.vmem [#allocation3], %s260
        %v262 = vld [vmem:[%s1] sm:$0xff]
        %v263 = vld [vmem:[%s1 + $0x8] sm:$0xff]
        %v264 = vld [vmem:[%s1 + $0x10] sm:$0xff]
        %v265 = vld [vmem:[%s1 + $0x18] sm:$0xff]
        %v266 = vld [vmem:[%s1 + $0x20] sm:$0xff]
        %v267 = vld [vmem:[%s1 + $0x28] sm:$0xff]
        %v268 = vld [vmem:[%s1 + $0x30] sm:$0xff]
        %v269 = vld [vmem:[%s1 + $0x38] sm:$0xff]
        %v270 = vld [vmem:[%s1 + $0x40] sm:$0xff]
        %v271 = vld [vmem:[%s1 + $0x48] sm:$0xff]
        %v272 = vld [vmem:[%s1 + $0x50] sm:$0xff]
        %v273 = vld [vmem:[%s1 + $0x58] sm:$0xff]
        %v274 = vld [vmem:[%s1 + $0x60] sm:$0xff]
        %v275 = vld [vmem:[%s1 + $0x68] sm:$0xff]
        %v276 = vld [vmem:[%s1 + $0x70] sm:$0xff]
        %v277 = vld [vmem:[%s1 + $0x78] sm:$0xff]
        %v278 = vld [vmem:[%s1 + $0x80] sm:$0xff]
        %v279 = vld [vmem:[%s1 + $0x88] sm:$0xff]
        %v280 = vld [vmem:[%s1 + $0x90] sm:$0xff]
        %v281 = vld [vmem:[%s1 + $0x98] sm:$0xff]
        %v282 = vld [vmem:[%s1 + $0xa0] sm:$0xff]
        %v283 = vld [vmem:[%s1 + $0xa8] sm:$0xff]
        %v284 = vld [vmem:[%s1 + $0xb0] sm:$0xff]
        %v285 = vld [vmem:[%s1 + $0xb8] sm:$0xff]
        %v286 = vld [vmem:[%s1 + $0xc0] sm:$0xff]
        %v287 = vld [vmem:[%s1 + $0xc8] sm:$0xff]
        %v288 = vld [vmem:[%s237] sm:$0xff]
        %v289 = vld [vmem:[%s237 + $0x8] sm:$0xff]
        %v290 = vld [vmem:[%s2] sm:$0xff]
        %v291 = vld [vmem:[%s2 + $0x8] sm:$0xff]
        %v292 = vld [vmem:[%s2 + $0x10] sm:$0xff]
        %v293 = vld [vmem:[%s2 + $0x18] sm:$0xff]
        %v294 = vld [vmem:[%s2 + $0x20] sm:$0xff]
        %v295 = vld [vmem:[%s2 + $0x28] sm:$0xff]
        %v296 = vld [vmem:[%s2 + $0x30] sm:$0xff]
        %v297 = vld [vmem:[%s2 + $0x38] sm:$0xff]
        %v298 = vld [vmem:[%s2 + $0x40] sm:$0xff]
        %v299 = vld [vmem:[%s2 + $0x48] sm:$0xff]
        %v300 = vld [vmem:[%s2 + $0x50] sm:$0xff]
        %v301 = vld [vmem:[%s2 + $0x58] sm:$0xff]
        %v302 = vld [vmem:[%s2 + $0x60] sm:$0xff]
        %v303 = vld [vmem:[%s2 + $0x68] sm:$0xff]
        %v304 = vld [vmem:[%s2 + $0x70] sm:$0xff]
        %v305 = vld [vmem:[%s2 + $0x78] sm:$0xff]
        %v306 = vld [vmem:[%s2 + $0x80] sm:$0xff]
        %v307 = vld [vmem:[%s2 + $0x88] sm:$0xff]
        %v308 = vld [vmem:[%s2 + $0x90] sm:$0xff]
        %v309 = vld [vmem:[%s2 + $0x98] sm:$0xff]
        %v310 = vld [vmem:[%s2 + $0xa0] sm:$0xff]
        %v311 = vld [vmem:[%s2 + $0xa8] sm:$0xff]
        %v312 = vld [vmem:[%s2 + $0xb0] sm:$0xff]
        %v313 = vld [vmem:[%s2 + $0xb8] sm:$0xff]
        %v314 = vld [vmem:[%s2 + $0xc0] sm:$0xff]
        %v315 = vld [vmem:[%s2 + $0xc8] sm:$0xff]
        %317 = vset.pattern.permute.xlu0 0
        %318 = vperm.xlu0 %317, %v290
        %v319 = vpop.permute.xlu0 %318
        %322 = vset.pattern.permute.xlu0 0
        %323 = vperm.xlu0 %322, %v291
        %v324 = vpop.permute.xlu0 %323
        %327 = vset.pattern.permute.xlu0 0
        %328 = vperm.xlu0 %327, %v292
        %v329 = vpop.permute.xlu0 %328
        %332 = vset.pattern.permute.xlu0 0
        %333 = vperm.xlu0 %332, %v293
        %v334 = vpop.permute.xlu0 %333
        %337 = vset.pattern.permute.xlu0 0
        %338 = vperm.xlu0 %337, %v294
        %v339 = vpop.permute.xlu0 %338
        %342 = vset.pattern.permute.xlu0 0
        %343 = vperm.xlu0 %342, %v295
        %v344 = vpop.permute.xlu0 %343
        %347 = vset.pattern.permute.xlu0 0
        %348 = vperm.xlu0 %347, %v296
        %v349 = vpop.permute.xlu0 %348
        %352 = vset.pattern.permute.xlu0 0
        %353 = vperm.xlu0 %352, %v297
        %v354 = vpop.permute.xlu0 %353
        %357 = vset.pattern.permute.xlu0 0
        %358 = vperm.xlu0 %357, %v298
        %v359 = vpop.permute.xlu0 %358
        %362 = vset.pattern.permute.xlu0 0
        %363 = vperm.xlu0 %362, %v299
        %v364 = vpop.permute.xlu0 %363
        %367 = vset.pattern.permute.xlu0 0
        %368 = vperm.xlu0 %367, %v300
        %v369 = vpop.permute.xlu0 %368
        %372 = vset.pattern.permute.xlu0 0
        %373 = vperm.xlu0 %372, %v301
        %v374 = vpop.permute.xlu0 %373
        %377 = vset.pattern.permute.xlu0 0
        %378 = vperm.xlu0 %377, %v302
        %v379 = vpop.permute.xlu0 %378
        %382 = vset.pattern.permute.xlu0 0
        %383 = vperm.xlu0 %382, %v303
        %v384 = vpop.permute.xlu0 %383
        %387 = vset.pattern.permute.xlu0 0
        %388 = vperm.xlu0 %387, %v304
        %v389 = vpop.permute.xlu0 %388
        %392 = vset.pattern.permute.xlu0 0
        %393 = vperm.xlu0 %392, %v305
        %v394 = vpop.permute.xlu0 %393
        %397 = vset.pattern.permute.xlu0 0
        %398 = vperm.xlu0 %397, %v306
        %v399 = vpop.permute.xlu0 %398
        %402 = vset.pattern.permute.xlu0 0
        %403 = vperm.xlu0 %402, %v307
        %v404 = vpop.permute.xlu0 %403
        %407 = vset.pattern.permute.xlu0 0
        %408 = vperm.xlu0 %407, %v308
        %v409 = vpop.permute.xlu0 %408
        %412 = vset.pattern.permute.xlu0 0
        %413 = vperm.xlu0 %412, %v309
        %v414 = vpop.permute.xlu0 %413
        %417 = vset.pattern.permute.xlu0 0
        %418 = vperm.xlu0 %417, %v310
        %v419 = vpop.permute.xlu0 %418
        %422 = vset.pattern.permute.xlu0 0
        %423 = vperm.xlu0 %422, %v311
        %v424 = vpop.permute.xlu0 %423
        %427 = vset.pattern.permute.xlu0 0
        %428 = vperm.xlu0 %427, %v312
        %v429 = vpop.permute.xlu0 %428
        %432 = vset.pattern.permute.xlu0 0
        %433 = vperm.xlu0 %432, %v313
        %v434 = vpop.permute.xlu0 %433
        %437 = vset.pattern.permute.xlu0 0
        %438 = vperm.xlu0 %437, %v314
        %v439 = vpop.permute.xlu0 %438
        %442 = vset.pattern.permute.xlu0 0
        %443 = vperm.xlu0 %442, %v315
        %v444 = vpop.permute.xlu0 %443
        %vm446 = vcmask 130048
        %v448 = vsel %vm446, %v262, 0
        %v451 = vsel %vm446, %v263, 0
        %v454 = vsel %vm446, %v264, 0
        %v457 = vsel %vm446, %v265, 0
        %v460 = vsel %vm446, %v266, 0
        %v463 = vsel %vm446, %v267, 0
        %v466 = vsel %vm446, %v268, 0
        %v469 = vsel %vm446, %v269, 0
        %v472 = vsel %vm446, %v270, 0
        %v475 = vsel %vm446, %v271, 0
        %v478 = vsel %vm446, %v272, 0
        %v481 = vsel %vm446, %v273, 0
        %v484 = vsel %vm446, %v274, 0
        %v487 = vsel %vm446, %v275, 0
        %v490 = vsel %vm446, %v276, 0
        %v493 = vsel %vm446, %v277, 0
        %v496 = vsel %vm446, %v278, 0
        %v499 = vsel %vm446, %v279, 0
        %v502 = vsel %vm446, %v280, 0
        %v505 = vsel %vm446, %v281, 0
        %v508 = vsel %vm446, %v282, 0
        %v511 = vsel %vm446, %v283, 0
        %v514 = vsel %vm446, %v284, 0
        %v517 = vsel %vm446, %v285, 0
        %v520 = vsel %vm446, %v286, 0
        %v523 = vsel %vm446, %v287, 0
        %525 = vmatpush.msra.mxu0 0.0
        %526 = vmatpush.msra.mxu0 0.0
        %527 = vmatpush.msra.mxu0 0.0
        %528 = vmatpush.msra.mxu0 0.0
        %529 = vmatpush.msra.mxu0 0.0
        %530 = vmatpush.msra.mxu0 0.0
        %531 = vmatpush.msra.mxu0 0.0
        %532 = vmatpush.msra.mxu0 0.0
        %533 = vmatpush.msra.mxu0 0.0
        %534 = vmatpush.msra.mxu0 0.0
        %535 = vmatpush.msra.mxu0 0.0
        %536 = vmatpush.msra.mxu0 0.0
        %537 = vmatpush.msra.mxu0 0.0
        %538 = vmatpush.msra.mxu0 0.0
        %539 = vmatpush.msra.mxu0 %v289
        %540 = vmatpush.msra.mxu0 %v288
        %541 = vmatmul.f32.gmra.mxu0 %v448
        %v542 = vpop.f32.mrf.mxu0
        %v543 = vadd.f32 %v319, %v542
        %544 = vmatmul.f32.gmra.mxu0 %v451
        %v545 = vpop.f32.mrf.mxu0
        %v546 = vadd.f32 %v324, %v545
        %547 = vmatmul.f32.gmra.mxu0 %v454
        %v548 = vpop.f32.mrf.mxu0
        %v549 = vadd.f32 %v329, %v548
        %550 = vmatmul.f32.gmra.mxu0 %v457
        %v551 = vpop.f32.mrf.mxu0
        %v552 = vadd.f32 %v334, %v551
        %553 = vmatmul.f32.gmra.mxu0 %v460
        %v554 = vpop.f32.mrf.mxu0
        %v555 = vadd.f32 %v339, %v554
        %556 = vmatmul.f32.gmra.mxu0 %v463
        %v557 = vpop.f32.mrf.mxu0
        %v558 = vadd.f32 %v344, %v557
        %559 = vmatmul.f32.gmra.mxu0 %v466
        %v560 = vpop.f32.mrf.mxu0
        %v561 = vadd.f32 %v349, %v560
        %562 = vmatmul.f32.gmra.mxu0 %v469
        %v563 = vpop.f32.mrf.mxu0
        %v564 = vadd.f32 %v354, %v563
        %565 = vmatmul.f32.gmra.mxu0 %v472
        %v566 = vpop.f32.mrf.mxu0
        %v567 = vadd.f32 %v359, %v566
        %568 = vmatmul.f32.gmra.mxu0 %v475
        %v569 = vpop.f32.mrf.mxu0
        %v570 = vadd.f32 %v364, %v569
        %571 = vmatmul.f32.gmra.mxu0 %v478
        %v572 = vpop.f32.mrf.mxu0
        %v573 = vadd.f32 %v369, %v572
        %574 = vmatmul.f32.gmra.mxu0 %v481
        %v575 = vpop.f32.mrf.mxu0
        %v576 = vadd.f32 %v374, %v575
        %577 = vmatmul.f32.gmra.mxu0 %v484
        %v578 = vpop.f32.mrf.mxu0
        %v579 = vadd.f32 %v379, %v578
        %580 = vmatmul.f32.gmra.mxu0 %v487
        %v581 = vpop.f32.mrf.mxu0
        %v582 = vadd.f32 %v384, %v581
        %583 = vmatmul.f32.gmra.mxu0 %v490
        %v584 = vpop.f32.mrf.mxu0
        %v585 = vadd.f32 %v389, %v584
        %586 = vmatmul.f32.gmra.mxu0 %v493
        %v587 = vpop.f32.mrf.mxu0
        %v588 = vadd.f32 %v394, %v587
        %589 = vmatmul.f32.gmra.mxu0 %v496
        %v590 = vpop.f32.mrf.mxu0
        %v591 = vadd.f32 %v399, %v590
        %592 = vmatmul.f32.gmra.mxu0 %v499
        %v593 = vpop.f32.mrf.mxu0
        %v594 = vadd.f32 %v404, %v593
        %595 = vmatmul.f32.gmra.mxu0 %v502
        %v596 = vpop.f32.mrf.mxu0
        %v597 = vadd.f32 %v409, %v596
        %598 = vmatmul.f32.gmra.mxu0 %v505
        %v599 = vpop.f32.mrf.mxu0
        %v600 = vadd.f32 %v414, %v599
        %601 = vmatmul.f32.gmra.mxu0 %v508
        %v602 = vpop.f32.mrf.mxu0
        %v603 = vadd.f32 %v419, %v602
        %604 = vmatmul.f32.gmra.mxu0 %v511
        %v605 = vpop.f32.mrf.mxu0
        %v606 = vadd.f32 %v424, %v605
        %607 = vmatmul.f32.gmra.mxu0 %v514
        %v608 = vpop.f32.mrf.mxu0
        %v609 = vadd.f32 %v429, %v608
        %610 = vmatmul.f32.gmra.mxu0 %v517
        %v611 = vpop.f32.mrf.mxu0
        %v612 = vadd.f32 %v434, %v611
        %613 = vmatmul.f32.gmra.mxu0 %v520
        %v614 = vpop.f32.mrf.mxu0
        %v615 = vadd.f32 %v439, %v614
        %616 = vmatmul.f32.gmra.mxu0 %v523
        %v617 = vpop.f32.mrf.mxu0
        %v618 = vadd.f32 %v444, %v617
        %619 = vdwg.mxu0
        %v620 = vmax.f32 %v543, 0.0
        %v621 = vmax.f32 %v546, 0.0
        %v622 = vmax.f32 %v549, 0.0
        %v623 = vmax.f32 %v552, 0.0
        %v624 = vmax.f32 %v555, 0.0
        %v625 = vmax.f32 %v558, 0.0
        %v626 = vmax.f32 %v561, 0.0
        %v627 = vmax.f32 %v564, 0.0
        %v628 = vmax.f32 %v567, 0.0
        %v629 = vmax.f32 %v570, 0.0
        %v630 = vmax.f32 %v573, 0.0
        %v631 = vmax.f32 %v576, 0.0
        %v632 = vmax.f32 %v579, 0.0
        %v633 = vmax.f32 %v582, 0.0
        %v634 = vmax.f32 %v585, 0.0
        %v635 = vmax.f32 %v588, 0.0
        %v636 = vmax.f32 %v591, 0.0
        %v637 = vmax.f32 %v594, 0.0
        %v638 = vmax.f32 %v597, 0.0
        %v639 = vmax.f32 %v600, 0.0
        %v640 = vmax.f32 %v603, 0.0
        %v641 = vmax.f32 %v606, 0.0
        %v642 = vmax.f32 %v609, 0.0
        %v643 = vmax.f32 %v612, 0.0
        %v644 = vld [vmem:[%s3] sm:$0xff]
        %v645 = vld [vmem:[%s3 + $0x8] sm:$0xff]
        %v646 = vld [vmem:[%s3 + $0x10] sm:$0xff]
        %v647 = vld [vmem:[%s3 + $0x18] sm:$0xff]
        %vm648 = vcmask 523264
        %v650 = vsel %vm648, %v645, 0
        %v653 = vsel %vm648, %v647, 0
        %655 = vmatpush.msra.mxu0 %v635
        %656 = vmatpush.msra.mxu0 %v634
        %657 = vmatpush.msra.mxu0 %v633
        %658 = vmatpush.msra.mxu0 %v632
        %659 = vmatpush.msra.mxu0 %v631
        %660 = vmatpush.msra.mxu0 %v630
        %661 = vmatpush.msra.mxu0 %v629
        %662 = vmatpush.msra.mxu0 %v628
        %663 = vmatpush.msra.mxu0 %v627
        %664 = vmatpush.msra.mxu0 %v626
        %665 = vmatpush.msra.mxu0 %v625
        %666 = vmatpush.msra.mxu0 %v624
        %667 = vmatpush.msra.mxu0 %v623
        %668 = vmatpush.msra.mxu0 %v622
        %669 = vmatpush.msra.mxu0 %v621
        %670 = vmatpush.msra.mxu0 %v620
        %671 = vmatmul.f32.gmra.mxu0 %v644
        %v672 = vpop.f32.mrf.mxu0
        %v673 = vadd.f32 0.0, %v672
        %674 = vmatmul.f32.gmra.mxu0 %v646
        %v675 = vpop.f32.mrf.mxu0
        %v676 = vadd.f32 0.0, %v675
        %677 = vdwg.mxu0
        %678 = vmatpush.msra.mxu0 0.0
        %679 = vmatpush.msra.mxu0 0.0
        %680 = vmatpush.msra.mxu0 0.0
        %681 = vmatpush.msra.mxu0 0.0
        %682 = vmatpush.msra.mxu0 0.0
        %683 = vmatpush.msra.mxu0 0.0
        %684 = vmatpush.msra.mxu0 0.0
        %685 = vmatpush.msra.mxu0 0.0
        %686 = vmatpush.msra.mxu0 %v643
        %687 = vmatpush.msra.mxu0 %v642
        %688 = vmatpush.msra.mxu0 %v641
        %689 = vmatpush.msra.mxu0 %v640
        %690 = vmatpush.msra.mxu0 %v639
        %691 = vmatpush.msra.mxu0 %v638
        %692 = vmatpush.msra.mxu0 %v637
        %693 = vmatpush.msra.mxu0 %v636
        %694 = vmatmul.f32.gmra.mxu0 %v650
        %v695 = vpop.f32.mrf.mxu0
        %v696 = vadd.f32 %v673, %v695
        %697 = vmatmul.f32.gmra.mxu0 %v653
        %v698 = vpop.f32.mrf.mxu0
        %v699 = vadd.f32 %v676, %v698
        %700 = vdwg.mxu0
        %v701 = vadd.f32 %v615, %v696
        %v702 = vadd.f32 %v618, %v699
        %v703 = vmax.f32 %v701, 0.0
        %v704 = vand.u32 2147483647, %v701
        %v705 = vsub.f32 0.0, %v704
        %v706 = vmul.f32 %v705, 1.442695
        %v707 = vpow.pop %v706
        %v708 = vadd.f32 %v707, 1.0
        %v709 = vlog2.pop %v708
        %v710 = vmul.f32 %v709, 0.6931472
        %v711 = vmul.f32 -0.5, %v707
        %v712 = vadd.f32 %v711, 1.0
        %v713 = vmul.f32 %v712, %v707
        %v714 = vand.u32 2147483647, %v707
        %vm715 = vcmp.lt.f32.partialorder %v714, 0.0004427343
        %v716 = vsel %vm715, %v713, %v710
        %v717 = vadd.f32 %v703, %v716
        %v718 = vadd.f32 %v717, 1e-20
        %v719 = vmax.f32 %v702, 0.0
        %v720 = vand.u32 2147483647, %v702
        %v721 = vsub.f32 0.0, %v720
        %v722 = vmul.f32 %v721, 1.442695
        %v723 = vpow.pop %v722
        %v724 = vadd.f32 %v723, 1.0
        %v725 = vlog2.pop %v724
        %v726 = vmul.f32 %v725, 0.6931472
        %v727 = vmul.f32 -0.5, %v723
        %v728 = vadd.f32 %v727, 1.0
        %v729 = vmul.f32 %v728, %v723
        %v730 = vand.u32 2147483647, %v723
        %vm731 = vcmp.lt.f32.partialorder %v730, 0.0004427343
        %v732 = vsel %vm731, %v729, %v726
        %v733 = vadd.f32 %v719, %v732
        %v734 = vadd.f32 %v733, 1e-20
        %v735 = vadd.f32 %v718, %v734
        %v736 = vrcp.pop %v735
        %v737 = vmul.f32 %v735, %v736
        %v738 = vsub.f32 1.0, %v737
        %v739 = vmul.f32 %v736, %v738
        %v740 = vadd.f32 %v736, %v739
        %vm741 = vweird.f32 %v735
        %vm742 = vweird.f32 %v736
        %vm743 = vmor %vm741, %vm742
        %v744 = vsel %vm743, %v736, %v740
        %v745 = vand.u32 2147483647, %v735
        %vm746 = vcmp.eq.f32.partialorder %v745, 8.507059e+37
        %v747 = vand.u32 %v735, 2147483648
        %v748 = vor.u32 1.1754944e-38, %v747
        %v749 = vsel %vm746, %v748, %v744
        %v750 = vmul.f32 %v718, %v749
        %v751 = vld [vmem:[%s4] sm:$0xff]
        %753 = vset.pattern.permute.xlu0 0
        %754 = vperm.xlu0 %753, %v751
        %v755 = vpop.permute.xlu0 %754
        %v757 = vmul.f32 %v750, %v755
        %758 = vst [vmem:[%s261] sm:$0xff] %v757
        %s759 = sand.u32 %s137, 1
        %s760 = scalar_lea.sflag [#allocation4], %s759
        %s761 = sand.u32 %s137, 1
        %s762 = smul.addr %s761, 8
        %s763 = scalar_lea.vmem [#allocation3], %s762
        // Predicated region
        $region79: #{tpu_custom_call.1} parent=73 // pred_check
          %p764 = pneg %p147
        $region80: #{tpu_custom_call.1} parent=73 // pred_check_branch
          %766 = sbr.rel (%p764) target = $region82
        $region81: #{tpu_custom_call.1} parent=73 // pred_region
          %768 = vsyncadd %s760, 0
          %s769 = smul.addr %s19, 8
          %s770 = scalar_lea.hbm %s5, %s769
          %s772 = sshll.u32 %s763, 4
          %s773 = int_to_ptr.vmem [resolvable:$true] %s772
          %s774 = sshll.u32 %s770, 4
          %s775 = int_to_ptr.hbm [resolvable:$true] %s774
          %777 = dma.vmem_to_hbm [thread:$0]  %s773, 128, %s775, %s760
        $region82: #{tpu_custom_call.1} parent=73 // pred_fallthru
          _
      $region74: #{tpu_custom_call.1} parent=5 // pred_fallthru
        _
      %p778 = scmp.le.s32.totalorder 2, %s14
      // Predicated region
      $region83: #{tpu_custom_call.1} parent=5 // pred_check
        %p779 = pneg %p778
      $region84: #{tpu_custom_call.1} parent=5 // pred_check_branch
        %781 = sbr.rel (%p779) target = $region86
      $region85: #{tpu_custom_call.1} parent=5 // pred_region
        %s782 = ssub.s32 %s14, 2
        // Predicated region
        $region87: #{tpu_custom_call.1} parent=85 // pred_check
          %p783 = pneg %p153
        $region88: #{tpu_custom_call.1} parent=85 // pred_check_branch
          %785 = sbr.rel (%p783) target = $region90
        $region89: #{tpu_custom_call.1} parent=85 // pred_region
          %s786 = sand.u32 %s138, 1
          %s787 = scalar_lea.sflag [#allocation4], %s786
          %s788 = sand.u32 %s138, 1
          %s789 = smul.addr %s788, 8
          %s790 = scalar_lea.vmem [#allocation3], %s789
          %792 = dma.done %s787, 128
        $region90: #{tpu_custom_call.1} parent=85 // pred_fallthru
          _
      $region86: #{tpu_custom_call.1} parent=5 // pred_fallthru
        _
    $region6: #{tpu_custom_call.1} parent=1 // loop_footer
      %s18 = sadd.s32 1, %s14
    $region7: #{tpu_custom_call.1} parent=1 // loop_footer_branch
      %13 = sbr.rel target = $region3
    $region8: #{tpu_custom_call.1} parent=1 // loop_exit
      _
    %793 = vsyncpa [#allocation4], 1
    %s794 = scalar_lea.sflag [#allocation4], 1
    %795 = vsyncpa %s794, 1

</llo_original>
